<compile_context>
chip_gen: v6e
topology: v6e:2x2x1
jax: 0.10.0
libtpu: 0.0.40
codegen_flags: <defaults>
</compile_context>

<pallas_src>
import numpy as np
import jax
import jax.numpy as jnp
from jax.experimental import pallas as pl
from jax.experimental.pallas import tpu as pltpu

# ---------------- model configuration (small, consistent with the module) --------------
CAT_FIELD_DIMS = (8, 12, 6)                 # categorical_field_dims
NUM_FIELDS = len(CAT_FIELD_DIMS)
NUMERICAL_NUM = 5
EMBED_DIM = 16
D_EMB = (NUM_FIELDS + 1) * EMBED_DIM        # 64 = embed_output_dim
BOTTOM_MLP_DIMS = (32, 16)
TOWER_MLP_DIMS = (16, 8)
TASK_NUM = 2
EXPERT_NUM = 4
RAY_HIDDEN = 64
BATCH = 16
BN_EPS = 1e-5

E = EXPERT_NUM
D1 = BOTTOM_MLP_DIMS[0]                     # 32
D2 = BOTTOM_MLP_DIMS[1]                     # 16
T = TASK_NUM
TD1 = TOWER_MLP_DIMS[0]                     # 16
TD2 = TOWER_MLP_DIMS[1]                     # 8

EH1 = E * D1                                # 128  fused expert hidden width
EH2 = E * D2                                # 64   fused expert output width
L1W = EH1 + E                               # 132  fused first-layer width (experts || gate)
TH1 = T * TD1                               # 32   fused tower hidden-1 width
TH2 = T * TD2                               # 16   fused tower hidden-2 width


# ================================ Pallas kernel =======================================
def pomoe_kernel(emb_ref, l1_ref, gate_ref, l2_ref, t1_ref, t2_ref, to_ref, out_ref):
    emb = emb_ref[...]                                                     # (B, 64)

    # fused first layer: all 4 experts (lanes 0:128) + gate first linear (lanes 128:132)
    x1 = (jnp.dot(emb, l1_ref[:D_EMB, :], preferred_element_type=jnp.float32)
          + l1_ref[D_EMB:D_EMB + 1, :])                                    # (B, 132)
    h1 = jnp.maximum(x1[:, :EH1], 0.0)                                     # (B, 128) expert hidden
    g1 = x1[:, EH1:]                                                       # (B, 4)   gate pre-act (no relu)

    # gate second linear, pre-expanded so each expert's gate value fills D2 lanes
    gate = jnp.maximum(
        jnp.dot(g1, gate_ref[:E, :], preferred_element_type=jnp.float32)
        + gate_ref[E:E + 1, :], 0.0)                                       # (B, 64)

    # fused expert second layer (block-diagonal weights)
    h2 = jnp.maximum(
        jnp.dot(h1, l2_ref[:EH1, :], preferred_element_type=jnp.float32)
        + l2_ref[EH1:EH1 + 1, :], 0.0)                                     # (B, 64)

    # mixture: one VPU multiply; the 4-expert reduction is folded into the tower-1 weights
    mixed = gate * h2                                                      # (B, 64)

    # both towers fused (lane-dense): hidden1 -> hidden2 -> logits -> sigmoid
    y = jnp.maximum(
        jnp.dot(mixed, t1_ref[:EH2, :], preferred_element_type=jnp.float32)
        + t1_ref[EH2:EH2 + 1, :], 0.0)                                     # (B, 32)
    y = jnp.maximum(
        jnp.dot(y, t2_ref[:TH1, :], preferred_element_type=jnp.float32)
        + t2_ref[TH1:TH1 + 1, :], 0.0)                                     # (B, 16)
    logits = (jnp.dot(y, to_ref[:TH2, :], preferred_element_type=jnp.float32)
              + to_ref[TH2:TH2 + 1, :])                                    # (B, 2)
    out_ref[...] = jax.nn.sigmoid(logits)                                  # single full-block store


def pomoe_moe_pallas(emb, l1_slab, gate_slab, l2_slab, t1_slab, t2_slab, to_slab):
    B = emb.shape[0]
    operands = (emb, l1_slab, gate_slab, l2_slab, t1_slab, t2_slab, to_slab)
    in_specs = [pl.BlockSpec(op.shape, lambda i, nd=len(op.shape): (0,) * nd)
                for op in operands]
    return pl.pallas_call(
        pomoe_kernel,
        out_shape=jax.ShapeDtypeStruct((B, T), jnp.float32),
        grid=(1,),                                          # whole problem in one step
        in_specs=in_specs,
        out_specs=pl.BlockSpec((B, T), lambda i: (0, 0)),
        compiler_params=pltpu.CompilerParams(dimension_semantics=("arbitrary",)),
    )(*operands)


# ================================ parameter setup =====================================
def _uinit(key, shape, scale=0.2):
    return jax.random.uniform(key, shape, jnp.float32, -scale, scale)


def init_params(key):
    ks = iter(jax.random.split(key, 64))
    p = {}
    # embedding table + numerical linear (weights stored as (in, out))
    p["emb_table"] = _uinit(next(ks), (sum(CAT_FIELD_DIMS), EMBED_DIM))
    p["num_w"] = _uinit(next(ks), (NUMERICAL_NUM, EMBED_DIM))
    p["num_b"] = _uinit(next(ks), (EMBED_DIM,))
    # HyperNet ray_mlp: 2 -> 64 -> 256 -> RAY_HIDDEN, then 4 heads
    p["r1_w"], p["r1_b"] = _uinit(next(ks), (2, 64)), _uinit(next(ks), (64,))
    p["r2_w"], p["r2_b"] = _uinit(next(ks), (64, 256)), _uinit(next(ks), (256,))
    p["r3_w"], p["r3_b"] = _uinit(next(ks), (256, RAY_HIDDEN)), _uinit(next(ks), (RAY_HIDDEN,))
    p["h_gw1_w"] = _uinit(next(ks), (RAY_HIDDEN, D_EMB * E))
    p["h_gw1_b"] = _uinit(next(ks), (D_EMB * E,))
    p["h_gw2_w"] = _uinit(next(ks), (RAY_HIDDEN, E * E))
    p["h_gw2_b"] = _uinit(next(ks), (E * E,))
    p["h_gb1_w"] = _uinit(next(ks), (RAY_HIDDEN, E))
    p["h_gb1_b"] = _uinit(next(ks), (E,))
    p["h_gb2_w"] = _uinit(next(ks), (RAY_HIDDEN, E))
    p["h_gb2_b"] = _uinit(next(ks), (E,))

    def mlp_layer(kw, kb, kg, kbe, n, din, dout):
        # Linear (in,out) + BatchNorm1d(gamma, beta, running_mean=0, running_var=1)
        return dict(w=_uinit(kw, (n, din, dout)), b=_uinit(kb, (n, dout)),
                    gamma=1.0 + _uinit(kg, (n, dout), 0.1), beta=_uinit(kbe, (n, dout), 0.1),
                    mean=jnp.zeros((n, dout), jnp.float32), var=jnp.ones((n, dout), jnp.float32))

    # experts: D_EMB -> 32 -> 16 (no output layer)
    p["e1"] = mlp_layer(next(ks), next(ks), next(ks), next(ks), E, D_EMB, D1)
    p["e2"] = mlp_layer(next(ks), next(ks), next(ks), next(ks), E, D1, D2)
    # towers: 16 -> 16 -> 8 -> 1
    p["t1"] = mlp_layer(next(ks), next(ks), next(ks), next(ks), T, D2, TD1)
    p["t2"] = mlp_layer(next(ks), next(ks), next(ks), next(ks), T, TD1, TD2)
    p["t_out_w"] = _uinit(next(ks), (T, TD2, 1))
    p["t_out_b"] = _uinit(next(ks), (1, T))
    return p


def fold_bn(layer):
    """Fold eval-mode BatchNorm1d into the preceding Linear: y = x@W_eff + b_eff."""
    scale = layer["gamma"] / jnp.sqrt(layer["var"] + BN_EPS)        # (n, dout)
    w_eff = layer["w"] * scale[:, None, :]
    b_eff = (layer["b"] - layer["mean"]) * scale + layer["beta"]
    return w_eff, b_eff


# ================================ plain-JAX glue ======================================
def hypernet_forward(ray, p):
    """HyperNet (per-ray, tiny): produces the gate (TargetNet) weights. Dropout = identity."""
    h = jax.nn.relu(ray @ p["r1_w"] + p["r1_b"])
    h = jax.nn.relu(h @ p["r2_w"] + p["r2_b"])
    f = h @ p["r3_w"] + p["r3_b"]
    gw1 = f @ p["h_gw1_w"] + p["h_gw1_b"]     # (D_EMB * E,)
    gw2 = f @ p["h_gw2_w"] + p["h_gw2_b"]     # (E * E,)
    gb1 = f @ p["h_gb1_w"] + p["h_gb1_b"]     # (E,)
    gb2 = f @ p["h_gb2_w"] + p["h_gb2_b"]     # (E,)
    return gw1, gw2, gb1, gb2


def build_emb(categorical_x, numerical_x, p):
    offsets = jnp.asarray(np.concatenate([[0], np.cumsum(CAT_FIELD_DIMS)[:-1]]), jnp.int32)
    idx = categorical_x + offsets[None, :]
    cat_emb = p["emb_table"][idx]                               # (B, F, EMBED_DIM)
    num_emb = numerical_x @ p["num_w"] + p["num_b"]             # (B, EMBED_DIM)
    emb = jnp.concatenate([cat_emb, num_emb[:, None, :]], axis=1)
    return emb.reshape(-1, D_EMB)                               # (B, (F+1)*EMBED_DIM)


def build_weight_slabs(p, gw1, gw2, gb1, gb2):
    """Pack the 15 small per-layer tensors into 6 lane-dense weight slabs (bias = last row)."""
    ew1, eb1 = fold_bn(p["e1"])            # (E, 64, 32), (E, 32)
    ew2, eb2 = fold_bn(p["e2"])            # (E, 32, 16), (E, 16)
    tw1, tb1 = fold_bn(p["t1"])            # (T, 16, 16), (T, 16)
    tw2, tb2 = fold_bn(p["t2"])            # (T, 16, 8),  (T, 8)
    two, tbo = p["t_out_w"], p["t_out_b"]  # (T, 8, 1),   (1, T)

    # slab 1: [expert W1 concat | gate W1^T] with bias as the final row -> (65, 132)
    ew1_cat = jnp.concatenate([ew1[e] for e in range(E)], axis=1)                  # (64, 128)
    gw1t = gw1.reshape(E, D_EMB).T                                                 # (64, 4)
    w1_all = jnp.concatenate([ew1_cat, gw1t], axis=1)                              # (64, 132)
    b1_all = jnp.concatenate([eb1.reshape(1, EH1), gb1.reshape(1, E)], axis=1)     # (1, 132)
    l1_slab = jnp.concatenate([w1_all, b1_all], axis=0)                            # (65, 132)

    # slab 2: gate second linear pre-expanded to E*D2 lanes (relu commutes with replication) -> (5, 64)
    expand = jnp.kron(jnp.eye(E, dtype=jnp.float32), jnp.ones((1, D2), jnp.float32))  # (4, 64)
    gw2t = gw2.reshape(E, E).T
    gate_slab = jnp.concatenate([gw2t @ expand, gb2.reshape(1, E) @ expand], axis=0)  # (5, 64)

    # slab 3: expert second layer as a single block-diagonal matmul -> (129, 64)
    ew2_bd = jnp.zeros((EH1, EH2), jnp.float32)
    for e in range(E):
        ew2_bd = ew2_bd.at[e * D1:(e + 1) * D1, e * D2:(e + 1) * D2].set(ew2[e])
    l2_slab = jnp.concatenate([ew2_bd, eb2.reshape(1, EH2)], axis=0)               # (129, 64)

    # slab 4: both towers' first layer with the 4-expert mixture reduction folded in -> (65, 32)
    tw1_cat = jnp.concatenate([tw1[t] for t in range(T)], axis=1)                  # (16, 32)
    t1_slab = jnp.concatenate([jnp.tile(tw1_cat, (E, 1)), tb1.reshape(1, TH1)], axis=0)

    # slab 5: both towers' second layer, block-diagonal -> (33, 16)
    tw2_bd = jnp.zeros((TH1, TH2), jnp.float32)
    for t in range(T):
        tw2_bd = tw2_bd.at[t * TD1:(t + 1) * TD1, t * TD2:(t + 1) * TD2].set(tw2[t])
    t2_slab = jnp.concatenate([tw2_bd, tb2.reshape(1, TH2)], axis=0)

    # slab 6: both towers' output layer, block-diagonal -> (17, 2)
    two_bd = jnp.zeros((TH2, T), jnp.float32)
    for t in range(T):
        two_bd = two_bd.at[t * TD2:(t + 1) * TD2, t:t + 1].set(two[t])
    to_slab = jnp.concatenate([two_bd, tbo.reshape(1, T)], axis=0)

    return l1_slab, gate_slab, l2_slab, t1_slab, t2_slab, to_slab


@jax.jit
def pomoe_forward(categorical_x, numerical_x, ray, p):
    emb = build_emb(categorical_x, numerical_x, p)
    gw1, gw2, gb1, gb2 = hypernet_forward(ray, p)
    slabs = build_weight_slabs(p, gw1, gw2, gb1, gb2)
    out = pomoe_moe_pallas(emb, *slabs)
    # matches the list of per-task sigmoid outputs of the PyTorch forward
    return [out[:, t] for t in range(T)]


# ================================ pure-JAX reference ==================================
def pomoe_reference(categorical_x, numerical_x, ray, p):
    emb = build_emb(categorical_x, numerical_x, p)
    gw1, gw2, gb1, gb2 = hypernet_forward(ray, p)
    g = emb @ gw1.reshape(E, D_EMB).T + gb1
    g = g @ gw2.reshape(E, E).T + gb2
    g = jax.nn.relu(g)
    ew1, eb1 = fold_bn(p["e1"])
    ew2, eb2 = fold_bn(p["e2"])
    feas = []
    for e in range(E):
        h = jax.nn.relu(emb @ ew1[e] + eb1[e])
        h = jax.nn.relu(h @ ew2[e] + eb2[e])
        feas.append(h)
    fea = jnp.einsum("be,bed->bd", g, jnp.stack(feas, axis=1))
    tw1, tb1 = fold_bn(p["t1"])
    tw2, tb2 = fold_bn(p["t2"])
    outs = []
    for t in range(T):
        y = jax.nn.relu(fea @ tw1[t] + tb1[t])
        y = jax.nn.relu(y @ tw2[t] + tb2[t])
        outs.append(jax.nn.sigmoid((y @ p["t_out_w"][t])[:, 0] + p["t_out_b"][0, t]))
    return outs


# ======================================= main =========================================
if __name__ == "__main__":
    key = jax.random.PRNGKey(0)
    kp, kc, kn, kr = jax.random.split(key, 4)
    params = init_params(kp)

    cat_keys = jax.random.split(kc, NUM_FIELDS)
    categorical_x = jnp.concatenate(
        [jax.random.randint(cat_keys[i], (BATCH, 1), 0, CAT_FIELD_DIMS[i]) for i in range(NUM_FIELDS)],
        axis=1).astype(jnp.int32)                               # (B, num_fields)
    numerical_x = jax.random.uniform(kn, (BATCH, NUMERICAL_NUM), jnp.float32)
    ray = jax.random.uniform(kr, (2,), jnp.float32)
    ray = ray / jnp.sum(ray)                                    # preference ray on the simplex

    results = pomoe_forward(categorical_x, numerical_x, ray, params)
    results = [jax.block_until_ready(r) for r in results]

    ref = pomoe_reference(categorical_x, numerical_x, ray, params)
    for r_pal, r_ref in zip(results, ref):
        np.testing.assert_allclose(np.asarray(r_pal), np.asarray(r_ref), rtol=1e-3, atol=5e-3)

    print("KERNEL_OK")
</pallas_src>

<mosaic_0001>
module attributes {stable_mosaic.version = 11 : i64} {
  func.func @pomoe_kernel(%arg0: i32, %arg1: memref<16x64xf32, #tpu.memory_space<vmem>>, %arg2: memref<65x132xf32, #tpu.memory_space<vmem>>, %arg3: memref<5x64xf32, #tpu.memory_space<vmem>>, %arg4: memref<129x64xf32, #tpu.memory_space<vmem>>, %arg5: memref<65x32xf32, #tpu.memory_space<vmem>>, %arg6: memref<33x16xf32, #tpu.memory_space<vmem>>, %arg7: memref<17x2xf32, #tpu.memory_space<vmem>>, %arg8: memref<16x2xf32, #tpu.memory_space<vmem>>) attributes {dimension_semantics = [#tpu.dimension_semantics<arbitrary>], iteration_bounds = array<i64: 1>, scalar_prefetch = 0 : i64, scratch_operands = 0 : i64, tpu.core_type = #tpu.core_type<tc>, window_params = [{pipeline_mode = #tpu.pipeline_mode<synchronous>, transform_indices = @transform_0, window_bounds = array<i64: 16, 64>}, {pipeline_mode = #tpu.pipeline_mode<synchronous>, transform_indices = @transform_1, window_bounds = array<i64: 65, 132>}, {pipeline_mode = #tpu.pipeline_mode<synchronous>, transform_indices = @transform_2, window_bounds = array<i64: 5, 64>}, {pipeline_mode = #tpu.pipeline_mode<synchronous>, transform_indices = @transform_3, window_bounds = array<i64: 129, 64>}, {pipeline_mode = #tpu.pipeline_mode<synchronous>, transform_indices = @transform_4, window_bounds = array<i64: 65, 32>}, {pipeline_mode = #tpu.pipeline_mode<synchronous>, transform_indices = @transform_5, window_bounds = array<i64: 33, 16>}, {pipeline_mode = #tpu.pipeline_mode<synchronous>, transform_indices = @transform_6, window_bounds = array<i64: 17, 2>}, {pipeline_mode = #tpu.pipeline_mode<synchronous>, transform_indices = @transform_7, window_bounds = array<i64: 16, 2>}]} {
    %c0 = arith.constant 0 : index
    %c0_0 = arith.constant 0 : index
    %0 = vector.load %arg1[%c0, %c0_0] : memref<16x64xf32, #tpu.memory_space<vmem>>, vector<16x64xf32>
    %c0_1 = arith.constant 0 : index
    %c0_2 = arith.constant 0 : index
    %1 = vector.load %arg2[%c0_1, %c0_2] : memref<65x132xf32, #tpu.memory_space<vmem>>, vector<64x132xf32>
    %cst = arith.constant dense<0.000000e+00> : vector<16x132xf32>
    %2 = tpu.matmul %0, %1, %cst {dimension_numbers = #tpu.dot_dimension_numbers<[1], [0], [0], [1], [0, 0, 1, 1], [], []>} : vector<16x64xf32>, vector<64x132xf32>, vector<16x132xf32> -> vector<16x132xf32>
    %c64 = arith.constant 64 : index
    %c0_3 = arith.constant 0 : index
    %3 = vector.load %arg2[%c64, %c0_3] : memref<65x132xf32, #tpu.memory_space<vmem>>, vector<1x132xf32>
    %4 = vector.broadcast %3 : vector<1x132xf32> to vector<16x132xf32>
    %5 = arith.addf %2, %4 : vector<16x132xf32>
    %6 = vector.extract_strided_slice %5 {offsets = [0, 0], sizes = [16, 128], strides = [1, 1]} : vector<16x132xf32> to vector<16x128xf32>
    %cst_4 = arith.constant 0.000000e+00 : f32
    %7 = vector.broadcast %cst_4 : f32 to vector<16x128xf32>
    %8 = arith.maximumf %6, %7 : vector<16x128xf32>
    %9 = vector.extract_strided_slice %5 {offsets = [0, 128], sizes = [16, 4], strides = [1, 1]} : vector<16x132xf32> to vector<16x4xf32>
    %c0_5 = arith.constant 0 : index
    %c0_6 = arith.constant 0 : index
    %10 = vector.load %arg3[%c0_5, %c0_6] : memref<5x64xf32, #tpu.memory_space<vmem>>, vector<4x64xf32>
    %cst_7 = arith.constant dense<0.000000e+00> : vector<16x64xf32>
    %11 = tpu.matmul %9, %10, %cst_7 {dimension_numbers = #tpu.dot_dimension_numbers<[1], [0], [0], [1], [0, 0, 1, 1], [], []>} : vector<16x4xf32>, vector<4x64xf32>, vector<16x64xf32> -> vector<16x64xf32>
    %c4 = arith.constant 4 : index
    %c0_8 = arith.constant 0 : index
    %12 = vector.load %arg3[%c4, %c0_8] : memref<5x64xf32, #tpu.memory_space<vmem>>, vector<1x64xf32>
    %13 = vector.broadcast %12 : vector<1x64xf32> to vector<16x64xf32>
    %14 = arith.addf %11, %13 : vector<16x64xf32>
    %cst_9 = arith.constant 0.000000e+00 : f32
    %15 = vector.broadcast %cst_9 : f32 to vector<16x64xf32>
    %16 = arith.maximumf %14, %15 : vector<16x64xf32>
    %c0_10 = arith.constant 0 : index
    %c0_11 = arith.constant 0 : index
    %17 = vector.load %arg4[%c0_10, %c0_11] : memref<129x64xf32, #tpu.memory_space<vmem>>, vector<128x64xf32>
    %cst_12 = arith.constant dense<0.000000e+00> : vector<16x64xf32>
    %18 = tpu.matmul %8, %17, %cst_12 {dimension_numbers = #tpu.dot_dimension_numbers<[1], [0], [0], [1], [0, 0, 1, 1], [], []>} : vector<16x128xf32>, vector<128x64xf32>, vector<16x64xf32> -> vector<16x64xf32>
    %c128 = arith.constant 128 : index
    %c0_13 = arith.constant 0 : index
    %19 = vector.load %arg4[%c128, %c0_13] : memref<129x64xf32, #tpu.memory_space<vmem>>, vector<1x64xf32>
    %20 = vector.broadcast %19 : vector<1x64xf32> to vector<16x64xf32>
    %21 = arith.addf %18, %20 : vector<16x64xf32>
    %cst_14 = arith.constant 0.000000e+00 : f32
    %22 = vector.broadcast %cst_14 : f32 to vector<16x64xf32>
    %23 = arith.maximumf %21, %22 : vector<16x64xf32>
    %24 = arith.mulf %16, %23 : vector<16x64xf32>
    %c0_15 = arith.constant 0 : index
    %c0_16 = arith.constant 0 : index
    %25 = vector.load %arg5[%c0_15, %c0_16] : memref<65x32xf32, #tpu.memory_space<vmem>>, vector<64x32xf32>
    %cst_17 = arith.constant dense<0.000000e+00> : vector<16x32xf32>
    %26 = tpu.matmul %24, %25, %cst_17 {dimension_numbers = #tpu.dot_dimension_numbers<[1], [0], [0], [1], [0, 0, 1, 1], [], []>} : vector<16x64xf32>, vector<64x32xf32>, vector<16x32xf32> -> vector<16x32xf32>
    %c64_18 = arith.constant 64 : index
    %c0_19 = arith.constant 0 : index
    %27 = vector.load %arg5[%c64_18, %c0_19] : memref<65x32xf32, #tpu.memory_space<vmem>>, vector<1x32xf32>
    %28 = vector.broadcast %27 : vector<1x32xf32> to vector<16x32xf32>
    %29 = arith.addf %26, %28 : vector<16x32xf32>
    %cst_20 = arith.constant 0.000000e+00 : f32
    %30 = vector.broadcast %cst_20 : f32 to vector<16x32xf32>
    %31 = arith.maximumf %29, %30 : vector<16x32xf32>
    %c0_21 = arith.constant 0 : index
    %c0_22 = arith.constant 0 : index
    %32 = vector.load %arg6[%c0_21, %c0_22] : memref<33x16xf32, #tpu.memory_space<vmem>>, vector<32x16xf32>
    %cst_23 = arith.constant dense<0.000000e+00> : vector<16x16xf32>
    %33 = tpu.matmul %31, %32, %cst_23 {dimension_numbers = #tpu.dot_dimension_numbers<[1], [0], [0], [1], [0, 0, 1, 1], [], []>} : vector<16x32xf32>, vector<32x16xf32>, vector<16x16xf32> -> vector<16x16xf32>
    %c32 = arith.constant 32 : index
    %c0_24 = arith.constant 0 : index
    %34 = vector.load %arg6[%c32, %c0_24] : memref<33x16xf32, #tpu.memory_space<vmem>>, vector<1x16xf32>
    %35 = vector.broadcast %34 : vector<1x16xf32> to vector<16x16xf32>
    %36 = arith.addf %33, %35 : vector<16x16xf32>
    %cst_25 = arith.constant 0.000000e+00 : f32
    %37 = vector.broadcast %cst_25 : f32 to vector<16x16xf32>
    %38 = arith.maximumf %36, %37 : vector<16x16xf32>
    %c0_26 = arith.constant 0 : index
    %c0_27 = arith.constant 0 : index
    %39 = vector.load %arg7[%c0_26, %c0_27] : memref<17x2xf32, #tpu.memory_space<vmem>>, vector<16x2xf32>
    %cst_28 = arith.constant dense<0.000000e+00> : vector<16x2xf32>
    %40 = tpu.matmul %38, %39, %cst_28 {dimension_numbers = #tpu.dot_dimension_numbers<[1], [0], [0], [1], [0, 0, 1, 1], [], []>} : vector<16x16xf32>, vector<16x2xf32>, vector<16x2xf32> -> vector<16x2xf32>
    %c16 = arith.constant 16 : index
    %c0_29 = arith.constant 0 : index
    %41 = vector.load %arg7[%c16, %c0_29] : memref<17x2xf32, #tpu.memory_space<vmem>>, vector<1x2xf32>
    %42 = vector.broadcast %41 : vector<1x2xf32> to vector<16x2xf32>
    %43 = arith.addf %40, %42 : vector<16x2xf32>
    %44 = arith.negf %43 : vector<16x2xf32>
    %45 = math.exp %44 : vector<16x2xf32>
    %cst_30 = arith.constant 1.000000e+00 : f32
    %46 = vector.broadcast %cst_30 : f32 to vector<16x2xf32>
    %47 = arith.addf %46, %45 : vector<16x2xf32>
    %48 = arith.divf %46, %47 : vector<16x2xf32>
    %c0_31 = arith.constant 0 : index
    %c0_32 = arith.constant 0 : index
    %49 = vector.load %arg8[%c0_31, %c0_32] : memref<16x2xf32, #tpu.memory_space<vmem>>, vector<16x2xf32>
    tpu.vector_store %arg8[%c0_31, %c0_32], %48 {strides = array<i32>} : memref<16x2xf32, #tpu.memory_space<vmem>>, vector<16x2xf32>,
    return
  }
  func.func @transform_0(%arg0: i32) -> (i32, i32) {
    %c0_i32 = arith.constant 0 : i32
    %c0_i32_0 = arith.constant 0 : i32
    %c0_i32_1 = arith.constant 0 : i32
    return %c0_i32, %c0_i32_0 : i32, i32
  }
  func.func @transform_1(%arg0: i32) -> (i32, i32) {
    %c0_i32 = arith.constant 0 : i32
    %c0_i32_0 = arith.constant 0 : i32
    %c0_i32_1 = arith.constant 0 : i32
    return %c0_i32, %c0_i32_0 : i32, i32
  }
  func.func @transform_2(%arg0: i32) -> (i32, i32) {
    %c0_i32 = arith.constant 0 : i32
    %c0_i32_0 = arith.constant 0 : i32
    %c0_i32_1 = arith.constant 0 : i32
    return %c0_i32, %c0_i32_0 : i32, i32
  }
  func.func @transform_3(%arg0: i32) -> (i32, i32) {
    %c0_i32 = arith.constant 0 : i32
    %c0_i32_0 = arith.constant 0 : i32
    %c0_i32_1 = arith.constant 0 : i32
    return %c0_i32, %c0_i32_0 : i32, i32
  }
  func.func @transform_4(%arg0: i32) -> (i32, i32) {
    %c0_i32 = arith.constant 0 : i32
    %c0_i32_0 = arith.constant 0 : i32
    %c0_i32_1 = arith.constant 0 : i32
    return %c0_i32, %c0_i32_0 : i32, i32
  }
  func.func @transform_5(%arg0: i32) -> (i32, i32) {
    %c0_i32 = arith.constant 0 : i32
    %c0_i32_0 = arith.constant 0 : i32
    %c0_i32_1 = arith.constant 0 : i32
    return %c0_i32, %c0_i32_0 : i32, i32
  }
  func.func @transform_6(%arg0: i32) -> (i32, i32) {
    %c0_i32 = arith.constant 0 : i32
    %c0_i32_0 = arith.constant 0 : i32
    %c0_i32_1 = arith.constant 0 : i32
    return %c0_i32, %c0_i32_0 : i32, i32
  }
  func.func @transform_7(%arg0: i32) -> (i32, i32) {
    %c0_i32 = arith.constant 0 : i32
    %c0_i32_0 = arith.constant 0 : i32
    %c0_i32_1 = arith.constant 0 : i32
    return %c0_i32, %c0_i32_0 : i32, i32
  }
}

</mosaic_0001>

<llo_original>
// kernel: pomoe_forward.1
$region0: #{pomoe_forward.1}
  #allocation0 [shape = 'u32[]', space=smem, size = 0x4, offset = 0x4, fixed_abs, tag = 'smem constant byte address 0x4 - core index']
  #allocation1 [shape = 'u32[144,128]{1,0:T(1,128)}', space=vmem, size = 0x12000, scoped, tag = 'internal scratch']
  %s0 = inlined_call_operand.vmem [shape: f32[16,64], index: 0, kind: input, shape index: {}]
  %s1 = inlined_call_operand.vmem [shape: f32[65,132], index: 1, kind: input, shape index: {}]
  %s2 = inlined_call_operand.vmem [shape: f32[5,64], index: 2, kind: input, shape index: {}]
  %s3 = inlined_call_operand.vmem [shape: f32[129,64], index: 3, kind: input, shape index: {}]
  %s4 = inlined_call_operand.vmem [shape: f32[65,32], index: 4, kind: input, shape index: {}]
  %s5 = inlined_call_operand.vmem [shape: f32[33,16], index: 5, kind: input, shape index: {}]
  %s6 = inlined_call_operand.vmem [shape: f32[17,2], index: 6, kind: input, shape index: {}]
  %s7 = inlined_call_operand.vmem [shape: f32[16,2], index: 7, kind: output, shape index: {}]
  %s8 = sld [smem:[#allocation0]]
  $region38: #{pomoe_forward.1} parent=0
    _
  %s10 = ssub.s32 1, %s8
  %s11 = scalar_select 0, %s10, %s8
  // Predicated region
  $region2: #{pomoe_forward.1} parent=0 // pred_check
    _
  $region3: #{pomoe_forward.1} parent=0 // pred_check_branch
    %13 = sbr.rel (0) target = $region5
  $region4: #{pomoe_forward.1} parent=0 // pred_region
    _
  $region5: #{pomoe_forward.1} parent=0 // pred_fallthru
    _
  // Predicated region
  $region6: #{pomoe_forward.1} parent=0 // pred_check
    _
  $region7: #{pomoe_forward.1} parent=0 // pred_check_branch
    %15 = sbr.rel (0) target = $region9
  $region8: #{pomoe_forward.1} parent=0 // pred_region
    _
  $region9: #{pomoe_forward.1} parent=0 // pred_fallthru
    _
  // Predicated region
  $region10: #{pomoe_forward.1} parent=0 // pred_check
    _
  $region11: #{pomoe_forward.1} parent=0 // pred_check_branch
    %17 = sbr.rel (0) target = $region13
  $region12: #{pomoe_forward.1} parent=0 // pred_region
    _
  $region13: #{pomoe_forward.1} parent=0 // pred_fallthru
    _
  // Predicated region
  $region14: #{pomoe_forward.1} parent=0 // pred_check
    _
  $region15: #{pomoe_forward.1} parent=0 // pred_check_branch
    %19 = sbr.rel (0) target = $region17
  $region16: #{pomoe_forward.1} parent=0 // pred_region
    _
  $region17: #{pomoe_forward.1} parent=0 // pred_fallthru
    _
  // Predicated region
  $region18: #{pomoe_forward.1} parent=0 // pred_check
    _
  $region19: #{pomoe_forward.1} parent=0 // pred_check_branch
    %21 = sbr.rel (0) target = $region21
  $region20: #{pomoe_forward.1} parent=0 // pred_region
    _
  $region21: #{pomoe_forward.1} parent=0 // pred_fallthru
    _
  // Predicated region
  $region22: #{pomoe_forward.1} parent=0 // pred_check
    _
  $region23: #{pomoe_forward.1} parent=0 // pred_check_branch
    %23 = sbr.rel (0) target = $region25
  $region24: #{pomoe_forward.1} parent=0 // pred_region
    _
  $region25: #{pomoe_forward.1} parent=0 // pred_fallthru
    _
  // Predicated region
  $region26: #{pomoe_forward.1} parent=0 // pred_check
    _
  $region27: #{pomoe_forward.1} parent=0 // pred_check_branch
    %25 = sbr.rel (0) target = $region29
  $region28: #{pomoe_forward.1} parent=0 // pred_region
    _
  $region29: #{pomoe_forward.1} parent=0 // pred_fallthru
    _
  %v26 = vld [vmem:[%s0] sm:$0xff]
  %v27 = vld [vmem:[%s0 + $0x8] sm:$0xff]
  %v28 = vld [vmem:[%s1] sm:$0xff]
  %v29 = vld [vmem:[%s1 + $0x8] sm:$0xff]
  %v30 = vld [vmem:[%s1 + $0x10] sm:$0xff]
  %v31 = vld [vmem:[%s1 + $0x18] sm:$0xff]
  %v32 = vld [vmem:[%s1 + $0x20] sm:$0xff]
  %v33 = vld [vmem:[%s1 + $0x28] sm:$0xff]
  %v34 = vld [vmem:[%s1 + $0x30] sm:$0xff]
  %v35 = vld [vmem:[%s1 + $0x38] sm:$0xff]
  %v36 = vld [vmem:[%s1 + $0x40] sm:$0xff]
  %v37 = vld [vmem:[%s1 + $0x48] sm:$0xff]
  %v38 = vld [vmem:[%s1 + $0x50] sm:$0xff]
  %v39 = vld [vmem:[%s1 + $0x58] sm:$0xff]
  %v40 = vld [vmem:[%s1 + $0x60] sm:$0xff]
  %v41 = vld [vmem:[%s1 + $0x68] sm:$0xff]
  %v42 = vld [vmem:[%s1 + $0x70] sm:$0xff]
  %v43 = vld [vmem:[%s1 + $0x78] sm:$0xff]
  %s44 = scalar_lea.vmem %s1, 128
  %v45 = vld [vmem:[%s44] ss:$8 sm:$0x3]
  %v47 = vlaneseq
  %v48 = vshrl.u32 %v47, 7
  %v49 = vsub.s32 0, %v48
  %v50 = vrot.slane %v45, %v49
  %v51 = vlaneseq
  %v52 = vshrl.u32 %v51, 7
  %v53 = vsub.s32 1, %v52
  %v54 = vrot.slane %v45, %v53
  %vm57 = vcmask 523264
  %v59 = vsel %vm57, %v26, 0
  %v62 = vsel %vm57, %v27, 0
  %64 = vmatprep.subr.mxu0 0.0
  %65 = vmatpush1.msra.mxu0 0.0
  %66 = vmatprep.subr.mxu0 0.0
  %67 = vmatpush1.msra.mxu0 0.0
  %68 = vmatprep.subr.mxu0 0.0
  %69 = vmatpush1.msra.mxu0 0.0
  %70 = vmatprep.subr.mxu0 0.0
  %71 = vmatpush1.msra.mxu0 0.0
  %72 = vmatprep.subr.mxu0 0.0
  %73 = vmatpush1.msra.mxu0 0.0
  %74 = vmatprep.subr.mxu0 0.0
  %75 = vmatpush1.msra.mxu0 0.0
  %76 = vmatprep.subr.mxu0 0.0
  %77 = vmatpush1.msra.mxu0 0.0
  %78 = vmatprep.subr.mxu0 0.0
  %79 = vmatpush1.msra.mxu0 0.0
  %80 = vmatprep.subr.mxu0 %v43
  %81 = vmatpush1.msra.mxu0 %v42
  %82 = vmatprep.subr.mxu0 %v41
  %83 = vmatpush1.msra.mxu0 %v40
  %84 = vmatprep.subr.mxu0 %v39
  %85 = vmatpush1.msra.mxu0 %v38
  %86 = vmatprep.subr.mxu0 %v37
  %87 = vmatpush1.msra.mxu0 %v36
  %88 = vmatprep.subr.mxu0 %v35
  %89 = vmatpush1.msra.mxu0 %v34
  %90 = vmatprep.subr.mxu0 %v33
  %91 = vmatpush1.msra.mxu0 %v32
  %92 = vmatprep.subr.mxu0 %v31
  %93 = vmatpush1.msra.mxu0 %v30
  %94 = vmatprep.subr.mxu0 %v29
  %95 = vmatpush1.msra.mxu0 %v28
  %96 = vmatprep.subr.mxu0 0.0
  %97 = vmatpush2.msra.mxu0 0.0
  %98 = vmatprep.subr.mxu0 0.0
  %99 = vmatpush2.msra.mxu0 0.0
  %100 = vmatprep.subr.mxu0 0.0
  %101 = vmatpush2.msra.mxu0 0.0
  %102 = vmatprep.subr.mxu0 0.0
  %103 = vmatpush2.msra.mxu0 0.0
  %104 = vmatprep.subr.mxu0 0.0
  %105 = vmatpush2.msra.mxu0 0.0
  %106 = vmatprep.subr.mxu0 0.0
  %107 = vmatpush2.msra.mxu0 0.0
  %108 = vmatprep.subr.mxu0 0.0
  %109 = vmatpush2.msra.mxu0 0.0
  %110 = vmatprep.subr.mxu0 0.0
  %111 = vmatpush2.msra.mxu0 0.0
  %112 = vmatprep.subr.mxu0 0.0
  %113 = vmatpush2.msra.mxu0 0.0
  %114 = vmatprep.subr.mxu0 0.0
  %115 = vmatpush2.msra.mxu0 0.0
  %116 = vmatprep.subr.mxu0 0.0
  %117 = vmatpush2.msra.mxu0 0.0
  %118 = vmatprep.subr.mxu0 0.0
  %119 = vmatpush2.msra.mxu0 0.0
  %120 = vmatprep.subr.mxu0 0.0
  %121 = vmatpush2.msra.mxu0 0.0
  %122 = vmatprep.subr.mxu0 0.0
  %123 = vmatpush2.msra.mxu0 0.0
  %124 = vmatprep.subr.mxu0 0.0
  %125 = vmatpush2.msra.mxu0 0.0
  %126 = vmatprep.subr.mxu0 0.0
  %127 = vmatpush2.msra.mxu0 0.0
  %128 = vmatprep.mubr.f32.mxu0 0.0
  %129 = vmatmul.mubr.f32.gmra.mxu0 %v59
  %v130 = vpop.f32.mrf.mxu0
  %v131 = vadd.f32 %v50, %v130
  %v132 = vpop.f32.mrf.mxu0
  %v133 = vadd.f32 %v54, %v132
  %134 = vmatprep.mubr.f32.mxu0 0.0
  %135 = vmatmul.mubr.f32.gmra.mxu0 %v62
  %v136 = vpop.f32.mrf.mxu0
  %v137 = vadd.f32 %v50, %v136
  %v138 = vpop.f32.mrf.mxu0
  %v139 = vadd.f32 %v54, %v138
  %140 = vdwg.mxu0
  %v141 = vmax.f32 %v131, 0.0
  %v142 = vmax.f32 %v137, 0.0
  %v143 = vld [vmem:[%s2] sm:$0xf]
  %v144 = vld [vmem:[%s2 + $0x4] sm:$0x1]
  %v145 = vlaneseq
  %v146 = vshrl.u32 %v145, 7
  %v147 = vsub.s32 0, %v146
  %v148 = vrot.slane %v144, %v147
  %vm149 = vcmask 31744
  %v151 = vsel %vm149, %v133, 0
  %v154 = vsel %vm149, %v139, 0
  %vm156 = vcmask 1043456
  %v158 = vsel %vm156, %v143, 0
  %160 = vmatprep.subr.mxu0 0.0
  %161 = vmatpush1.msra.mxu0 0.0
  %162 = vmatprep.subr.mxu0 0.0
  %163 = vmatpush1.msra.mxu0 0.0
  %164 = vmatprep.subr.mxu0 0.0
  %165 = vmatpush1.msra.mxu0 0.0
  %166 = vmatprep.subr.mxu0 0.0
  %167 = vmatpush1.msra.mxu0 0.0
  %168 = vmatprep.subr.mxu0 0.0
  %169 = vmatpush1.msra.mxu0 0.0
  %170 = vmatprep.subr.mxu0 0.0
  %171 = vmatpush1.msra.mxu0 0.0
  %172 = vmatprep.subr.mxu0 0.0
  %173 = vmatpush1.msra.mxu0 0.0
  %174 = vmatprep.subr.mxu0 0.0
  %175 = vmatpush1.msra.mxu0 0.0
  %176 = vmatprep.subr.mxu0 0.0
  %177 = vmatpush1.msra.mxu0 0.0
  %178 = vmatprep.subr.mxu0 0.0
  %179 = vmatpush1.msra.mxu0 0.0
  %180 = vmatprep.subr.mxu0 0.0
  %181 = vmatpush1.msra.mxu0 0.0
  %182 = vmatprep.subr.mxu0 0.0
  %183 = vmatpush1.msra.mxu0 0.0
  %184 = vmatprep.subr.mxu0 0.0
  %185 = vmatpush1.msra.mxu0 0.0
  %186 = vmatprep.subr.mxu0 0.0
  %187 = vmatpush1.msra.mxu0 0.0
  %188 = vmatprep.subr.mxu0 0.0
  %189 = vmatpush1.msra.mxu0 0.0
  %190 = vmatprep.subr.mxu0 0.0
  %191 = vmatpush1.msra.mxu0 %v158
  %192 = vmatprep.subr.mxu0 0.0
  %193 = vmatpush2.msra.mxu0 0.0
  %194 = vmatprep.subr.mxu0 0.0
  %195 = vmatpush2.msra.mxu0 0.0
  %196 = vmatprep.subr.mxu0 0.0
  %197 = vmatpush2.msra.mxu0 0.0
  %198 = vmatprep.subr.mxu0 0.0
  %199 = vmatpush2.msra.mxu0 0.0
  %200 = vmatprep.subr.mxu0 0.0
  %201 = vmatpush2.msra.mxu0 0.0
  %202 = vmatprep.subr.mxu0 0.0
  %203 = vmatpush2.msra.mxu0 0.0
  %204 = vmatprep.subr.mxu0 0.0
  %205 = vmatpush2.msra.mxu0 0.0
  %206 = vmatprep.subr.mxu0 0.0
  %207 = vmatpush2.msra.mxu0 0.0
  %208 = vmatprep.subr.mxu0 0.0
  %209 = vmatpush2.msra.mxu0 0.0
  %210 = vmatprep.subr.mxu0 0.0
  %211 = vmatpush2.msra.mxu0 0.0
  %212 = vmatprep.subr.mxu0 0.0
  %213 = vmatpush2.msra.mxu0 0.0
  %214 = vmatprep.subr.mxu0 0.0
  %215 = vmatpush2.msra.mxu0 0.0
  %216 = vmatprep.subr.mxu0 0.0
  %217 = vmatpush2.msra.mxu0 0.0
  %218 = vmatprep.subr.mxu0 0.0
  %219 = vmatpush2.msra.mxu0 0.0
  %220 = vmatprep.subr.mxu0 0.0
  %221 = vmatpush2.msra.mxu0 0.0
  %222 = vmatprep.subr.mxu0 0.0
  %223 = vmatpush2.msra.mxu0 0.0
  %224 = vmatprep.mubr.f32.mxu0 0.0
  %225 = vmatmul.mubr.f32.gmra.mxu0 %v151
  %v226 = vpop.f32.mrf.mxu0
  %v227 = vadd.f32 %v148, %v226
  %v228 = vpop.f32.mrf.mxu0
  %229 = vmatprep.mubr.f32.mxu0 0.0
  %230 = vmatmul.mubr.f32.gmra.mxu0 %v154
  %v231 = vpop.f32.mrf.mxu0
  %v232 = vadd.f32 %v148, %v231
  %v233 = vpop.f32.mrf.mxu0
  %234 = vdwg.mxu0
  %v235 = vmax.f32 %v227, 0.0
  %v236 = vmax.f32 %v232, 0.0
  %v237 = vld [vmem:[%s3] sm:$0xff]
  %v238 = vld [vmem:[%s3 + $0x8] sm:$0xff]
  %v239 = vld [vmem:[%s3 + $0x10] sm:$0xff]
  %v240 = vld [vmem:[%s3 + $0x18] sm:$0xff]
  %v241 = vld [vmem:[%s3 + $0x20] sm:$0xff]
  %v242 = vld [vmem:[%s3 + $0x28] sm:$0xff]
  %v243 = vld [vmem:[%s3 + $0x30] sm:$0xff]
  %v244 = vld [vmem:[%s3 + $0x38] sm:$0xff]
  %v245 = vld [vmem:[%s3 + $0x40] sm:$0xff]
  %v246 = vld [vmem:[%s3 + $0x48] sm:$0xff]
  %v247 = vld [vmem:[%s3 + $0x50] sm:$0xff]
  %v248 = vld [vmem:[%s3 + $0x58] sm:$0xff]
  %v249 = vld [vmem:[%s3 + $0x60] sm:$0xff]
  %v250 = vld [vmem:[%s3 + $0x68] sm:$0xff]
  %v251 = vld [vmem:[%s3 + $0x70] sm:$0xff]
  %v252 = vld [vmem:[%s3 + $0x78] sm:$0xff]
  %v253 = vld [vmem:[%s3 + $0x80] sm:$0x1]
  %v254 = vlaneseq
  %v255 = vshrl.u32 %v254, 7
  %v256 = vsub.s32 0, %v255
  %v257 = vrot.slane %v253, %v256
  %258 = vmatprep.subr.mxu0 0.0
  %259 = vmatpush1.msra.mxu0 %v252
  %260 = vmatprep.subr.mxu0 0.0
  %261 = vmatpush1.msra.mxu0 %v251
  %262 = vmatprep.subr.mxu0 0.0
  %263 = vmatpush1.msra.mxu0 %v250
  %264 = vmatprep.subr.mxu0 0.0
  %265 = vmatpush1.msra.mxu0 %v249
  %266 = vmatprep.subr.mxu0 0.0
  %267 = vmatpush1.msra.mxu0 %v248
  %268 = vmatprep.subr.mxu0 0.0
  %269 = vmatpush1.msra.mxu0 %v247
  %270 = vmatprep.subr.mxu0 0.0
  %271 = vmatpush1.msra.mxu0 %v246
  %272 = vmatprep.subr.mxu0 0.0
  %273 = vmatpush1.msra.mxu0 %v245
  %274 = vmatprep.subr.mxu0 0.0
  %275 = vmatpush1.msra.mxu0 %v244
  %276 = vmatprep.subr.mxu0 0.0
  %277 = vmatpush1.msra.mxu0 %v243
  %278 = vmatprep.subr.mxu0 0.0
  %279 = vmatpush1.msra.mxu0 %v242
  %280 = vmatprep.subr.mxu0 0.0
  %281 = vmatpush1.msra.mxu0 %v241
  %282 = vmatprep.subr.mxu0 0.0
  %283 = vmatpush1.msra.mxu0 %v240
  %284 = vmatprep.subr.mxu0 0.0
  %285 = vmatpush1.msra.mxu0 %v239
  %286 = vmatprep.subr.mxu0 0.0
  %287 = vmatpush1.msra.mxu0 %v238
  %288 = vmatprep.subr.mxu0 0.0
  %289 = vmatpush1.msra.mxu0 %v237
  %290 = vmatprep.subr.mxu0 0.0
  %291 = vmatpush2.msra.mxu0 0.0
  %292 = vmatprep.subr.mxu0 0.0
  %293 = vmatpush2.msra.mxu0 0.0
  %294 = vmatprep.subr.mxu0 0.0
  %295 = vmatpush2.msra.mxu0 0.0
  %296 = vmatprep.subr.mxu0 0.0
  %297 = vmatpush2.msra.mxu0 0.0
  %298 = vmatprep.subr.mxu0 0.0
  %299 = vmatpush2.msra.mxu0 0.0
  %300 = vmatprep.subr.mxu0 0.0
  %301 = vmatpush2.msra.mxu0 0.0
  %302 = vmatprep.subr.mxu0 0.0
  %303 = vmatpush2.msra.mxu0 0.0
  %304 = vmatprep.subr.mxu0 0.0
  %305 = vmatpush2.msra.mxu0 0.0
  %306 = vmatprep.subr.mxu0 0.0
  %307 = vmatpush2.msra.mxu0 0.0
  %308 = vmatprep.subr.mxu0 0.0
  %309 = vmatpush2.msra.mxu0 0.0
  %310 = vmatprep.subr.mxu0 0.0
  %311 = vmatpush2.msra.mxu0 0.0
  %312 = vmatprep.subr.mxu0 0.0
  %313 = vmatpush2.msra.mxu0 0.0
  %314 = vmatprep.subr.mxu0 0.0
  %315 = vmatpush2.msra.mxu0 0.0
  %316 = vmatprep.subr.mxu0 0.0
  %317 = vmatpush2.msra.mxu0 0.0
  %318 = vmatprep.subr.mxu0 0.0
  %319 = vmatpush2.msra.mxu0 0.0
  %320 = vmatprep.subr.mxu0 0.0
  %321 = vmatpush2.msra.mxu0 0.0
  %322 = vmatprep.mubr.f32.mxu0 0.0
  %323 = vmatmul.mubr.f32.gmra.mxu0 %v141
  %v324 = vpop.f32.mrf.mxu0
  %v325 = vadd.f32 %v257, %v324
  %v326 = vpop.f32.mrf.mxu0
  %327 = vmatprep.mubr.f32.mxu0 0.0
  %328 = vmatmul.mubr.f32.gmra.mxu0 %v142
  %v329 = vpop.f32.mrf.mxu0
  %v330 = vadd.f32 %v257, %v329
  %v331 = vpop.f32.mrf.mxu0
  %332 = vdwg.mxu0
  %v333 = vmax.f32 %v325, 0.0
  %v334 = vmax.f32 %v330, 0.0
  %v335 = vmul.f32 %v235, %v333
  %v336 = vmul.f32 %v236, %v334
  %v337 = vld [vmem:[%s4] sm:$0xff]
  %v338 = vld [vmem:[%s4 + $0x8] sm:$0xff]
  %v339 = vld [vmem:[%s4 + $0x10] sm:$0xff]
  %v340 = vld [vmem:[%s4 + $0x18] sm:$0xff]
  %v341 = vld [vmem:[%s4 + $0x20] sm:$0xff]
  %v342 = vld [vmem:[%s4 + $0x28] sm:$0xff]
  %v343 = vld [vmem:[%s4 + $0x30] sm:$0xff]
  %v344 = vld [vmem:[%s4 + $0x38] sm:$0xff]
  %v345 = vld [vmem:[%s4 + $0x40] sm:$0x1]
  %v346 = vlaneseq
  %v347 = vshrl.u32 %v346, 7
  %v348 = vsub.s32 0, %v347
  %v349 = vrot.slane %v345, %v348
  %v351 = vsel %vm57, %v335, 0
  %v354 = vsel %vm57, %v336, 0
  %356 = vmatprep.subr.mxu0 0.0
  %357 = vmatpush1.msra.mxu0 0.0
  %358 = vmatprep.subr.mxu0 0.0
  %359 = vmatpush1.msra.mxu0 0.0
  %360 = vmatprep.subr.mxu0 0.0
  %361 = vmatpush1.msra.mxu0 0.0
  %362 = vmatprep.subr.mxu0 0.0
  %363 = vmatpush1.msra.mxu0 0.0
  %364 = vmatprep.subr.mxu0 0.0
  %365 = vmatpush1.msra.mxu0 0.0
  %366 = vmatprep.subr.mxu0 0.0
  %367 = vmatpush1.msra.mxu0 0.0
  %368 = vmatprep.subr.mxu0 0.0
  %369 = vmatpush1.msra.mxu0 0.0
  %370 = vmatprep.subr.mxu0 0.0
  %371 = vmatpush1.msra.mxu0 0.0
  %372 = vmatprep.subr.mxu0 0.0
  %373 = vmatpush1.msra.mxu0 %v344
  %374 = vmatprep.subr.mxu0 0.0
  %375 = vmatpush1.msra.mxu0 %v343
  %376 = vmatprep.subr.mxu0 0.0
  %377 = vmatpush1.msra.mxu0 %v342
  %378 = vmatprep.subr.mxu0 0.0
  %379 = vmatpush1.msra.mxu0 %v341
  %380 = vmatprep.subr.mxu0 0.0
  %381 = vmatpush1.msra.mxu0 %v340
  %382 = vmatprep.subr.mxu0 0.0
  %383 = vmatpush1.msra.mxu0 %v339
  %384 = vmatprep.subr.mxu0 0.0
  %385 = vmatpush1.msra.mxu0 %v338
  %386 = vmatprep.subr.mxu0 0.0
  %387 = vmatpush1.msra.mxu0 %v337
  %388 = vmatprep.subr.mxu0 0.0
  %389 = vmatpush2.msra.mxu0 0.0
  %390 = vmatprep.subr.mxu0 0.0
  %391 = vmatpush2.msra.mxu0 0.0
  %392 = vmatprep.subr.mxu0 0.0
  %393 = vmatpush2.msra.mxu0 0.0
  %394 = vmatprep.subr.mxu0 0.0
  %395 = vmatpush2.msra.mxu0 0.0
  %396 = vmatprep.subr.mxu0 0.0
  %397 = vmatpush2.msra.mxu0 0.0
  %398 = vmatprep.subr.mxu0 0.0
  %399 = vmatpush2.msra.mxu0 0.0
  %400 = vmatprep.subr.mxu0 0.0
  %401 = vmatpush2.msra.mxu0 0.0
  %402 = vmatprep.subr.mxu0 0.0
  %403 = vmatpush2.msra.mxu0 0.0
  %404 = vmatprep.subr.mxu0 0.0
  %405 = vmatpush2.msra.mxu0 0.0
  %406 = vmatprep.subr.mxu0 0.0
  %407 = vmatpush2.msra.mxu0 0.0
  %408 = vmatprep.subr.mxu0 0.0
  %409 = vmatpush2.msra.mxu0 0.0
  %410 = vmatprep.subr.mxu0 0.0
  %411 = vmatpush2.msra.mxu0 0.0
  %412 = vmatprep.subr.mxu0 0.0
  %413 = vmatpush2.msra.mxu0 0.0
  %414 = vmatprep.subr.mxu0 0.0
  %415 = vmatpush2.msra.mxu0 0.0
  %416 = vmatprep.subr.mxu0 0.0
  %417 = vmatpush2.msra.mxu0 0.0
  %418 = vmatprep.subr.mxu0 0.0
  %419 = vmatpush2.msra.mxu0 0.0
  %420 = vmatprep.mubr.f32.mxu0 0.0
  %421 = vmatmul.mubr.f32.gmra.mxu0 %v351
  %v422 = vpop.f32.mrf.mxu0
  %v423 = vadd.f32 %v349, %v422
  %v424 = vpop.f32.mrf.mxu0
  %425 = vmatprep.mubr.f32.mxu0 0.0
  %426 = vmatmul.mubr.f32.gmra.mxu0 %v354
  %v427 = vpop.f32.mrf.mxu0
  %v428 = vadd.f32 %v349, %v427
  %v429 = vpop.f32.mrf.mxu0
  %430 = vdwg.mxu0
  %v431 = vmax.f32 %v423, 0.0
  %v432 = vmax.f32 %v428, 0.0
  %v433 = vld [vmem:[%s5] sm:$0xff]
  %v434 = vld [vmem:[%s5 + $0x8] sm:$0xff]
  %v435 = vld [vmem:[%s5 + $0x10] sm:$0xff]
  %v436 = vld [vmem:[%s5 + $0x18] sm:$0xff]
  %v437 = vld [vmem:[%s5 + $0x20] sm:$0x1]
  %v438 = vlaneseq
  %v439 = vshrl.u32 %v438, 7
  %v440 = vsub.s32 0, %v439
  %v441 = vrot.slane %v437, %v440
  %vm442 = vcmask 261120
  %v444 = vsel %vm442, %v431, 0
  %v447 = vsel %vm442, %v432, 0
  %449 = vmatprep.subr.mxu0 0.0
  %450 = vmatpush1.msra.mxu0 0.0
  %451 = vmatprep.subr.mxu0 0.0
  %452 = vmatpush1.msra.mxu0 0.0
  %453 = vmatprep.subr.mxu0 0.0
  %454 = vmatpush1.msra.mxu0 0.0
  %455 = vmatprep.subr.mxu0 0.0
  %456 = vmatpush1.msra.mxu0 0.0
  %457 = vmatprep.subr.mxu0 0.0
  %458 = vmatpush1.msra.mxu0 0.0
  %459 = vmatprep.subr.mxu0 0.0
  %460 = vmatpush1.msra.mxu0 0.0
  %461 = vmatprep.subr.mxu0 0.0
  %462 = vmatpush1.msra.mxu0 0.0
  %463 = vmatprep.subr.mxu0 0.0
  %464 = vmatpush1.msra.mxu0 0.0
  %465 = vmatprep.subr.mxu0 0.0
  %466 = vmatpush1.msra.mxu0 0.0
  %467 = vmatprep.subr.mxu0 0.0
  %468 = vmatpush1.msra.mxu0 0.0
  %469 = vmatprep.subr.mxu0 0.0
  %470 = vmatpush1.msra.mxu0 0.0
  %471 = vmatprep.subr.mxu0 0.0
  %472 = vmatpush1.msra.mxu0 0.0
  %473 = vmatprep.subr.mxu0 0.0
  %474 = vmatpush1.msra.mxu0 %v436
  %475 = vmatprep.subr.mxu0 0.0
  %476 = vmatpush1.msra.mxu0 %v435
  %477 = vmatprep.subr.mxu0 0.0
  %478 = vmatpush1.msra.mxu0 %v434
  %479 = vmatprep.subr.mxu0 0.0
  %480 = vmatpush1.msra.mxu0 %v433
  %481 = vmatprep.subr.mxu0 0.0
  %482 = vmatpush2.msra.mxu0 0.0
  %483 = vmatprep.subr.mxu0 0.0
  %484 = vmatpush2.msra.mxu0 0.0
  %485 = vmatprep.subr.mxu0 0.0
  %486 = vmatpush2.msra.mxu0 0.0
  %487 = vmatprep.subr.mxu0 0.0
  %488 = vmatpush2.msra.mxu0 0.0
  %489 = vmatprep.subr.mxu0 0.0
  %490 = vmatpush2.msra.mxu0 0.0
  %491 = vmatprep.subr.mxu0 0.0
  %492 = vmatpush2.msra.mxu0 0.0
  %493 = vmatprep.subr.mxu0 0.0
  %494 = vmatpush2.msra.mxu0 0.0
  %495 = vmatprep.subr.mxu0 0.0
  %496 = vmatpush2.msra.mxu0 0.0
  %497 = vmatprep.subr.mxu0 0.0
  %498 = vmatpush2.msra.mxu0 0.0
  %499 = vmatprep.subr.mxu0 0.0
  %500 = vmatpush2.msra.mxu0 0.0
  %501 = vmatprep.subr.mxu0 0.0
  %502 = vmatpush2.msra.mxu0 0.0
  %503 = vmatprep.subr.mxu0 0.0
  %504 = vmatpush2.msra.mxu0 0.0
  %505 = vmatprep.subr.mxu0 0.0
  %506 = vmatpush2.msra.mxu0 0.0
  %507 = vmatprep.subr.mxu0 0.0
  %508 = vmatpush2.msra.mxu0 0.0
  %509 = vmatprep.subr.mxu0 0.0
  %510 = vmatpush2.msra.mxu0 0.0
  %511 = vmatprep.subr.mxu0 0.0
  %512 = vmatpush2.msra.mxu0 0.0
  %513 = vmatprep.mubr.f32.mxu0 0.0
  %514 = vmatmul.mubr.f32.gmra.mxu0 %v444
  %v515 = vpop.f32.mrf.mxu0
  %v516 = vadd.f32 %v441, %v515
  %v517 = vpop.f32.mrf.mxu0
  %518 = vmatprep.mubr.f32.mxu0 0.0
  %519 = vmatmul.mubr.f32.gmra.mxu0 %v447
  %v520 = vpop.f32.mrf.mxu0
  %v521 = vadd.f32 %v441, %v520
  %v522 = vpop.f32.mrf.mxu0
  %523 = vdwg.mxu0
  %v524 = vmax.f32 %v516, 0.0
  %v525 = vmax.f32 %v521, 0.0
  %v526 = vld [vmem:[%s6] sm:$0xff]
  %v527 = vld [vmem:[%s6 + $0x8] sm:$0xff]
  %v528 = vld [vmem:[%s6 + $0x10] sm:$0x1]
  %v529 = vlaneseq
  %v530 = vshrl.u32 %v529, 7
  %v531 = vsub.s32 0, %v530
  %v532 = vrot.slane %v528, %v531
  %vm533 = vcmask 130048
  %v535 = vsel %vm533, %v524, 0
  %v538 = vsel %vm533, %v525, 0
  %540 = vmatprep.subr.mxu0 0.0
  %541 = vmatpush1.msra.mxu0 0.0
  %542 = vmatprep.subr.mxu0 0.0
  %543 = vmatpush1.msra.mxu0 0.0
  %544 = vmatprep.subr.mxu0 0.0
  %545 = vmatpush1.msra.mxu0 0.0
  %546 = vmatprep.subr.mxu0 0.0
  %547 = vmatpush1.msra.mxu0 0.0
  %548 = vmatprep.subr.mxu0 0.0
  %549 = vmatpush1.msra.mxu0 0.0
  %550 = vmatprep.subr.mxu0 0.0
  %551 = vmatpush1.msra.mxu0 0.0
  %552 = vmatprep.subr.mxu0 0.0
  %553 = vmatpush1.msra.mxu0 0.0
  %554 = vmatprep.subr.mxu0 0.0
  %555 = vmatpush1.msra.mxu0 0.0
  %556 = vmatprep.subr.mxu0 0.0
  %557 = vmatpush1.msra.mxu0 0.0
  %558 = vmatprep.subr.mxu0 0.0
  %559 = vmatpush1.msra.mxu0 0.0
  %560 = vmatprep.subr.mxu0 0.0
  %561 = vmatpush1.msra.mxu0 0.0
  %562 = vmatprep.subr.mxu0 0.0
  %563 = vmatpush1.msra.mxu0 0.0
  %564 = vmatprep.subr.mxu0 0.0
  %565 = vmatpush1.msra.mxu0 0.0
  %566 = vmatprep.subr.mxu0 0.0
  %567 = vmatpush1.msra.mxu0 0.0
  %568 = vmatprep.subr.mxu0 0.0
  %569 = vmatpush1.msra.mxu0 %v527
  %570 = vmatprep.subr.mxu0 0.0
  %571 = vmatpush1.msra.mxu0 %v526
  %572 = vmatprep.subr.mxu0 0.0
  %573 = vmatpush2.msra.mxu0 0.0
  %574 = vmatprep.subr.mxu0 0.0
  %575 = vmatpush2.msra.mxu0 0.0
  %576 = vmatprep.subr.mxu0 0.0
  %577 = vmatpush2.msra.mxu0 0.0
  %578 = vmatprep.subr.mxu0 0.0
  %579 = vmatpush2.msra.mxu0 0.0
  %580 = vmatprep.subr.mxu0 0.0
  %581 = vmatpush2.msra.mxu0 0.0
  %582 = vmatprep.subr.mxu0 0.0
  %583 = vmatpush2.msra.mxu0 0.0
  %584 = vmatprep.subr.mxu0 0.0
  %585 = vmatpush2.msra.mxu0 0.0
  %586 = vmatprep.subr.mxu0 0.0
  %587 = vmatpush2.msra.mxu0 0.0
  %588 = vmatprep.subr.mxu0 0.0
  %589 = vmatpush2.msra.mxu0 0.0
  %590 = vmatprep.subr.mxu0 0.0
  %591 = vmatpush2.msra.mxu0 0.0
  %592 = vmatprep.subr.mxu0 0.0
  %593 = vmatpush2.msra.mxu0 0.0
  %594 = vmatprep.subr.mxu0 0.0
  %595 = vmatpush2.msra.mxu0 0.0
  %596 = vmatprep.subr.mxu0 0.0
  %597 = vmatpush2.msra.mxu0 0.0
  %598 = vmatprep.subr.mxu0 0.0
  %599 = vmatpush2.msra.mxu0 0.0
  %600 = vmatprep.subr.mxu0 0.0
  %601 = vmatpush2.msra.mxu0 0.0
  %602 = vmatprep.subr.mxu0 0.0
  %603 = vmatpush2.msra.mxu0 0.0
  %604 = vmatprep.mubr.f32.mxu0 0.0
  %605 = vmatmul.mubr.f32.gmra.mxu0 %v535
  %v606 = vpop.f32.mrf.mxu0
  %v607 = vadd.f32 %v532, %v606
  %v608 = vpop.f32.mrf.mxu0
  %609 = vmatprep.mubr.f32.mxu0 0.0
  %610 = vmatmul.mubr.f32.gmra.mxu0 %v538
  %v611 = vpop.f32.mrf.mxu0
  %v612 = vadd.f32 %v532, %v611
  %v613 = vpop.f32.mrf.mxu0
  %614 = vdwg.mxu0
  %v615 = vxor.u32 %v607, 2147483648
  %v616 = vxor.u32 %v612, 2147483648
  %v617 = vmul.f32 %v615, 1.442695
  %v618 = vpow.pop %v617
  %v619 = vmul.f32 %v616, 1.442695
  %v620 = vpow.pop %v619
  %v621 = vadd.f32 %v618, 1.0
  %v622 = vadd.f32 %v620, 1.0
  %v623 = vrcp.pop %v621
  %v624 = vmul.f32 1.0, %v623
  %v625 = vrcp.pop %v622
  %v626 = vmul.f32 1.0, %v625
  %vm627 = vcmask 15360
  %628 = vst.msk [vmem:[%s7] sm:$0xff] %vm627, %v624
  %629 = vst.msk [vmem:[%s7 + $0x8] sm:$0xff] %vm627, %v626
  // Predicated region
  $region30: #{pomoe_forward.1} parent=0 // pred_check
    _
  $region31: #{pomoe_forward.1} parent=0 // pred_check_branch
    %631 = sbr.rel (0) target = $region33
  $region32: #{pomoe_forward.1} parent=0 // pred_region
    _
  $region33: #{pomoe_forward.1} parent=0 // pred_fallthru
    _
  // Predicated region
  $region34: #{pomoe_forward.1} parent=0 // pred_check
    _
  $region35: #{pomoe_forward.1} parent=0 // pred_check_branch
    %633 = sbr.rel (0) target = $region37
  $region36: #{pomoe_forward.1} parent=0 // pred_region
    _
  $region37: #{pomoe_forward.1} parent=0 // pred_fallthru
    _

</llo_original>
